<compile_context>
chip_gen: v6e
topology: v6e:2x2x1
jax: 0.10.0
libtpu: 0.0.40
codegen_flags: <defaults>
</compile_context>

<pallas_src>
import functools

import jax
import jax.numpy as jnp
from jax.experimental import pallas as pl
from jax.experimental.pallas import tpu as pltpu

_LANES = 128
_SUBLANES = 8
_CHUNK_ROWS = 1024                      # rows per inner accumulation chunk
_TARGET_BLOCK_BYTES = 4 * 1024 * 1024   # ~4 MiB per input per grid step
_NUM_CORES = 2                          # leading "parallel" axis (v7x megacore)


def _round_up(x: int, m: int) -> int:
    return ((x + m - 1) // m) * m


def _sumsq_kernel(p_ref, t_ref, out_ref, acc_ref, *,
                  rows_valid, nb_per_core, block_rows, chunk_rows, needs_mask):
    """Accumulate sum((p - t)^2) over the sequential grid axis.

    p_ref, t_ref : (block_rows, 128) tiles (any float dtype; cast in-kernel)
    out_ref      : (1, 8, 128) f32 — this core's partial, written at last step
    acc_ref      : (8, 128) f32 VMEM scratch — vreg-shaped running accumulator
    """
    c = pl.program_id(0)   # parallel (core) axis
    i = pl.program_id(1)   # sequential reduction axis

    @pl.when(i == 0)
    def _():
        acc_ref[...] = jnp.zeros_like(acc_ref)

    # Global row offset this step *intends* to cover.  (The in_spec index_map
    # clamps the actual DMA in-bounds; masking below keeps correctness.)
    block_row0 = (c * nb_per_core + i) * block_rows
    num_chunks = block_rows // chunk_rows

    def chunk_body(k, carry):
        r0 = pl.multiple_of(k * chunk_rows, chunk_rows)
        p = p_ref[pl.ds(r0, chunk_rows), :].astype(jnp.float32)
        t = t_ref[pl.ds(r0, chunk_rows), :].astype(jnp.float32)
        d = p - t                      # diff computed once
        dd = d * d
        if needs_mask:
            # Zero rows past the true row count (ragged last block / OOB block).
            row = jax.lax.broadcasted_iota(jnp.int32, (chunk_rows, _LANES), 0)
            dd = jnp.where(block_row0 + r0 + row < rows_valid, dd, 0.0)
        # Fold the chunk's rows into the (8,128) accumulator with VPU adds only.
        acc_ref[...] += jnp.sum(dd.reshape(-1, _SUBLANES, _LANES), axis=0)
        return carry

    jax.lax.fori_loop(0, num_chunks, chunk_body, 0, unroll=True)

    @pl.when(i == pl.num_programs(1) - 1)
    def _():
        out_ref[0] = acc_ref[...]


def _sum_squared_diff(predictions, targets):
    """Scalar float32: sum over all elements of (pred - tgt)^2."""
    assert predictions.shape == targets.shape
    p = predictions.reshape(-1)
    t = targets.reshape(-1)
    n = p.shape[0]

    rows = n // _LANES
    if rows < _SUBLANES:
        # Tiny input (< 1024 elements): not worth a Pallas launch and below the
        # minimal (8,128) tile — plain JAX fallback.
        return jnp.sum(jnp.square(p.astype(jnp.float32) - t.astype(jnp.float32)))

    rem = n - rows * _LANES
    tail = jnp.zeros((), jnp.float32)
    if rem:
        # Sub-128 flat tail handled wrapper-side (tiny) instead of padding /
        # copying the whole array.
        pt = p[rows * _LANES:].astype(jnp.float32)
        tt = t[rows * _LANES:].astype(jnp.float32)
        tail = jnp.sum(jnp.square(pt - tt))
        # Only in this rare case does the main body need a (copying) slice;
        # when n % 128 == 0 the reshape below is free.
        p = p[: rows * _LANES]
        t = t[: rows * _LANES]

    p2 = p.reshape(rows, _LANES)
    t2 = t.reshape(rows, _LANES)

    itemsize = max(jnp.dtype(p2.dtype).itemsize, jnp.dtype(t2.dtype).itemsize)
    max_block_rows = max(_TARGET_BLOCK_BYTES // (_LANES * itemsize), _CHUNK_ROWS)

    rows_per_core = pl.cdiv(rows, _NUM_CORES)
    cap_rows = (rows // _SUBLANES) * _SUBLANES          # largest 8-multiple <= rows
    block_rows = min(max_block_rows, _round_up(rows_per_core, 16), cap_rows)
    if block_rows >= _CHUNK_ROWS:
        chunk_rows = _CHUNK_ROWS
        block_rows = (block_rows // _CHUNK_ROWS) * _CHUNK_ROWS
    else:
        chunk_rows = block_rows                          # multiple of 8

    nb_per_core = pl.cdiv(rows, _NUM_CORES * block_rows)
    nb_in_array = max(pl.cdiv(rows, block_rows), 1)
    needs_mask = (_NUM_CORES * nb_per_core * block_rows != rows)

    def in_index_map(c, i):
        b = c * nb_per_core + i
        return (jnp.minimum(b, nb_in_array - 1), 0)      # keep DMA in-bounds

    kernel = functools.partial(
        _sumsq_kernel,
        rows_valid=rows, nb_per_core=nb_per_core,
        block_rows=block_rows, chunk_rows=chunk_rows, needs_mask=needs_mask)

    block_bytes = block_rows * _LANES * itemsize
    # 2 inputs x 2 pipeline buffers + f32 chunk temporaries + headroom.
    # Explicit so v5e's 16 MiB scoped default doesn't throttle the block size,
    # while staying well inside v7x's 64 MiB physical VMEM.
    vmem_limit = int(min(48 * 1024 * 1024, 4 * block_bytes + 16 * 1024 * 1024))

    partials = pl.pallas_call(
        kernel,
        out_shape=jax.ShapeDtypeStruct((_NUM_CORES, _SUBLANES, _LANES), jnp.float32),
        grid=(_NUM_CORES, nb_per_core),
        in_specs=[
            pl.BlockSpec((block_rows, _LANES), in_index_map),
            pl.BlockSpec((block_rows, _LANES), in_index_map),
        ],
        out_specs=pl.BlockSpec((1, _SUBLANES, _LANES), lambda c, i: (c, 0, 0)),
        scratch_shapes=[pltpu.VMEM((_SUBLANES, _LANES), jnp.float32)],
        compiler_params=pltpu.CompilerParams(
            dimension_semantics=("parallel", "arbitrary"),
            vmem_limit_bytes=vmem_limit,
        ),
    )(p2, t2)

    # One tiny cross-lane reduction of the (2, 8, 128) partials on the host side
    # of the kernel (cheap XLA op), plus the sub-128 tail.
    return tail + jnp.sum(partials)


def rmse(predictions, targets, reduction: str = "mean"):
    """Forward pass matching the PyTorch RMSE module.

    reduction: 'mean' -> sqrt(mean((p - t)^2)); 'sum' -> sqrt(sum((p - t)^2)).
    (The PyTorch .view(N, -1) does not change the reduction result.)
    """
    if reduction not in ("mean", "sum"):
        raise ValueError(f"Reduction must be 'mean' or 'sum', got {reduction}")
    total = _sum_squared_diff(predictions, targets)
    if reduction == "mean":
        count = 1
        for s in predictions.shape:
            count *= s
        return jnp.sqrt(total / jnp.float32(count))
    return jnp.sqrt(total)


def _reference(predictions, targets, reduction: str = "mean"):
    """Pure-JAX reference mirroring the PyTorch forward."""
    p = predictions.astype(jnp.float32)
    t = targets.astype(jnp.float32)
    sq = jnp.square(p - t)
    if reduction == "mean":
        return jnp.sqrt(jnp.mean(sq))
    return jnp.sqrt(jnp.sum(sq))


if __name__ == "__main__":
    key = jax.random.PRNGKey(0)
    k1, k2 = jax.random.split(key)

    B, C, H, W = 2, 4, 16, 16
    predictions = jax.random.normal(k1, (B, C, H, W), dtype=jnp.float32)
    targets = jax.random.normal(k2, (B, C, H, W), dtype=jnp.float32)

    out_mean = jax.block_until_ready(rmse(predictions, targets, "mean"))
    out_sum = jax.block_until_ready(rmse(predictions, targets, "sum"))

    ref_mean = _reference(predictions, targets, "mean")
    ref_sum = _reference(predictions, targets, "sum")

    assert jnp.allclose(out_mean, ref_mean, rtol=1e-5, atol=1e-5), (out_mean, ref_mean)
    assert jnp.allclose(out_sum, ref_sum, rtol=1e-5, atol=1e-5), (out_sum, ref_sum)

    print("KERNEL_OK")
</pallas_src>

<mosaic_0001>
module attributes {stable_mosaic.version = 11 : i64} {
  func.func @_sumsq_kernel(%arg0: i32, %arg1: i32, %arg2: memref<16x128xf32, #tpu.memory_space<vmem>>, %arg3: memref<16x128xf32, #tpu.memory_space<vmem>>, %arg4: memref<1x8x128xf32, #tpu.memory_space<vmem>>, %arg5: memref<8x128xf32, #tpu.memory_space<vmem>>) attributes {dimension_semantics = [#tpu.dimension_semantics<parallel>, #tpu.dimension_semantics<arbitrary>], iteration_bounds = array<i64: 2, 1>, scalar_prefetch = 0 : i64, scratch_operands = 1 : i64, tpu.core_type = #tpu.core_type<tc>, window_params = [{transform_indices = @transform_0, window_bounds = array<i64: 16, 128>}, {transform_indices = @transform_1, window_bounds = array<i64: 16, 128>}, {transform_indices = @transform_2, window_bounds = array<i64: 1, 8, 128>}]} {
    %c0_i32 = arith.constant 0 : i32
    %0 = arith.cmpi eq, %arg1, %c0_i32 : i32
    %1 = arith.extui %0 : i1 to i32
    %c0_i32_0 = arith.constant 0 : i32
    %2 = arith.cmpi ne, %1, %c0_i32_0 : i32
    scf.if %2 {
      %cst_13 = arith.constant 0.000000e+00 : f32
      %30 = vector.broadcast %cst_13 : f32 to vector<8x128xf32>
      %c0_14 = arith.constant 0 : index
      %c0_15 = arith.constant 0 : index
      %31 = vector.load %arg5[%c0_14, %c0_15] : memref<8x128xf32, #tpu.memory_space<vmem>>, vector<8x128xf32>
      tpu.vector_store %arg5[%c0_14, %c0_15], %30 {strides = array<i32>} : memref<8x128xf32, #tpu.memory_space<vmem>>, vector<8x128xf32>,
    } else {
    }
    %c1_i32 = arith.constant 1 : i32
    %3 = arith.muli %arg0, %c1_i32 : i32
    %4 = arith.addi %3, %arg1 : i32
    %c16_i32 = arith.constant 16 : i32
    %5 = arith.muli %4, %c16_i32 : i32
    %c0_i32_1 = arith.constant 0 : i32
    %c16_i32_2 = arith.constant 16 : i32
    %6 = arith.muli %c0_i32_1, %c16_i32_2 : i32
    %7 = tpu.assume_multiple %6, 16 : i32
    %8 = arith.index_cast %7 : i32 to index
    %c0 = arith.constant 0 : index
    %9 = vector.load %arg2[%8, %c0] : memref<16x128xf32, #tpu.memory_space<vmem>>, vector<16x128xf32>
    %10 = arith.index_cast %7 : i32 to index
    %c0_3 = arith.constant 0 : index
    %11 = vector.load %arg3[%10, %c0_3] : memref<16x128xf32, #tpu.memory_space<vmem>>, vector<16x128xf32>
    %12 = arith.subf %9, %11 : vector<16x128xf32>
    %13 = arith.mulf %12, %12 : vector<16x128xf32>
    %14 = tpu.iota {dimensions = array<i32: 0>} : vector<16x128xi32>
    %15 = arith.addi %5, %7 : i32
    %16 = vector.broadcast %15 : i32 to vector<16x128xi32>
    %17 = arith.addi %16, %14 : vector<16x128xi32>
    %c16_i32_4 = arith.constant 16 : i32
    %18 = vector.broadcast %c16_i32_4 : i32 to vector<16x128xi32>
    %19 = arith.cmpi slt, %17, %18 : vector<16x128xi32>
    %cst = arith.constant 0.000000e+00 : f32
    %20 = vector.broadcast %cst : f32 to vector<16x128xf32>
    %21 = arith.select %19, %13, %20 : vector<16x128xi1>, vector<16x128xf32>
    %c0_5 = arith.constant 0 : index
    %c0_6 = arith.constant 0 : index
    %22 = vector.load %arg5[%c0_5, %c0_6] : memref<8x128xf32, #tpu.memory_space<vmem>>, vector<8x128xf32>
    %23 = vector.shape_cast %21 : vector<16x128xf32> to vector<2x8x128xf32>
    %cst_7 = arith.constant dense<0.000000e+00> : vector<8x128xf32>
    %24 = vector.multi_reduction <add>, %23, %cst_7 [0] : vector<2x8x128xf32> to vector<8x128xf32>
    %25 = arith.addf %22, %24 : vector<8x128xf32>
    %c0_8 = arith.constant 0 : index
    %c0_9 = arith.constant 0 : index
    %26 = vector.load %arg5[%c0_8, %c0_9] : memref<8x128xf32, #tpu.memory_space<vmem>>, vector<8x128xf32>
    tpu.vector_store %arg5[%c0_8, %c0_9], %25 {strides = array<i32>} : memref<8x128xf32, #tpu.memory_space<vmem>>, vector<8x128xf32>,
    %c1_i32_10 = arith.constant 1 : i32
    %c0_i32_11 = arith.constant 0 : i32
    %27 = arith.cmpi eq, %arg1, %c0_i32_11 : i32
    %28 = arith.extui %27 : i1 to i32
    %c0_i32_12 = arith.constant 0 : i32
    %29 = arith.cmpi ne, %28, %c0_i32_12 : i32
    scf.if %29 {
      %c0_13 = arith.constant 0 : index
      %c0_14 = arith.constant 0 : index
      %30 = vector.load %arg5[%c0_13, %c0_14] : memref<8x128xf32, #tpu.memory_space<vmem>>, vector<8x128xf32>
      %c0_15 = arith.constant 0 : index
      %c0_16 = arith.constant 0 : index
      %c0_17 = arith.constant 0 : index
      %31 = vector.load %arg4[%c0_15, %c0_16, %c0_17] : memref<1x8x128xf32, #tpu.memory_space<vmem>>, vector<1x8x128xf32>
      %32 = vector.shape_cast %31 : vector<1x8x128xf32> to vector<8x128xf32>
      %33 = vector.shape_cast %30 : vector<8x128xf32> to vector<1x8x128xf32>
      tpu.vector_store %arg4[%c0_15, %c0_16, %c0_17], %33 {strides = array<i32>} : memref<1x8x128xf32, #tpu.memory_space<vmem>>, vector<1x8x128xf32>,
    } else {
    }
    return
  }
  func.func @transform_0(%arg0: i32, %arg1: i32) -> (i32, i32) {
    %c1_i32 = arith.constant 1 : i32
    %0 = arith.muli %arg0, %c1_i32 : i32
    %1 = arith.addi %0, %arg1 : i32
    %c0_i32 = arith.constant 0 : i32
    %2 = arith.minsi %1, %c0_i32 : i32
    %c0_i32_0 = arith.constant 0 : i32
    %c0_i32_1 = arith.constant 0 : i32
    return %2, %c0_i32_0 : i32, i32
  }
  func.func @transform_1(%arg0: i32, %arg1: i32) -> (i32, i32) {
    %c1_i32 = arith.constant 1 : i32
    %0 = arith.muli %arg0, %c1_i32 : i32
    %1 = arith.addi %0, %arg1 : i32
    %c0_i32 = arith.constant 0 : i32
    %2 = arith.minsi %1, %c0_i32 : i32
    %c0_i32_0 = arith.constant 0 : i32
    %c0_i32_1 = arith.constant 0 : i32
    return %2, %c0_i32_0 : i32, i32
  }
  func.func @transform_2(%arg0: i32, %arg1: i32) -> (i32, i32, i32) {
    %c0_i32 = arith.constant 0 : i32
    %c0_i32_0 = arith.constant 0 : i32
    %c0_i32_1 = arith.constant 0 : i32
    return %arg0, %c0_i32, %c0_i32_0 : i32, i32, i32
  }
}

</mosaic_0001>

<llo_original>
// kernel: tpu_custom_call.1
$region0: #{tpu_custom_call.1}
  #allocation0 [shape = 'u32[]', space=smem, size = 0x4, offset = 0x4, fixed_abs, tag = 'smem constant byte address 0x4 - core index']
  #allocation1 [shape = 'u32[144,128]{1,0:T(1,128)}', space=vmem, size = 0x12000, scoped, tag = 'internal scratch']
  #allocation2 [shape = 'f32[8,128]{1,0:T(8,128)}', space=vmem, size = 0x1000, scoped, tag = 'scratch operand']
  %s0 = inlined_call_operand.hbm [shape: f32[16,128], index: 0, kind: input, shape index: {}]
  %s1 = inlined_call_operand.hbm [shape: f32[16,128], index: 1, kind: input, shape index: {}]
  %s2 = inlined_call_operand.hbm [shape: f32[2,8,128], index: 2, kind: output, shape index: {}]
  %s3 = sld [smem:[#allocation0]]
  $region57: #{tpu_custom_call.1} parent=0
    _
  %s5 = ssub.s32 1, %s3
  %s6 = scalar_select 0, %s5, %s3
  $region1: #{tpu_custom_call.1} parent=0
    #allocation3 [shape = 'u8[16384]{0}', space=vmem, size = 0x4000, scoped, tag = 'input window, operand 0']
    #allocation4 [shape = 's32[2]{0}', space=sflag, size = 0x8, scoped, tag = 'scoped memory for tpu_custom_call.1']
    #allocation5 [shape = 's32[2]{0}', space=sflag, size = 0x8, scoped, tag = 'scoped memory for tpu_custom_call.1']
    #allocation6 [shape = 'u8[16384]{0}', space=vmem, size = 0x4000, scoped, tag = 'input window, operand 1']
    #allocation7 [shape = 's32[2]{0}', space=sflag, size = 0x8, scoped, tag = 'scoped memory for tpu_custom_call.1']
    #allocation8 [shape = 'u8[8192]{0}', space=vmem, size = 0x2000, scoped, tag = 'output window, operand 0']
    %7 = vsyncpa [#allocation4], 0
    %s8 = scalar_lea.sflag [#allocation4], 1
    %9 = vsyncpa %s8, 0
    %10 = vsyncpa [#allocation7], 0
    %s11 = scalar_lea.sflag [#allocation7], 1
    %12 = vsyncpa %s11, 0
    %13 = vsyncpa [#allocation5], 0
    %s14 = scalar_lea.sflag [#allocation5], 1
    %15 = vsyncpa %s14, 0
    loop: start=0, step=1, limit=4
    $region2: #{tpu_custom_call.1} parent=1 // loop_pre_header
      _
    $region3: #{tpu_custom_call.1} parent=1 // loop_header
      %s17 = sphi 0, %s21
      %p18 = scmp.ge.s32.totalorder %s17, 4
      %s24 = sphi 0, %s36
      %s25 = sphi 0, %s32
      %s26 = sphi 0, %s24
      %s27 = sphi 0, %s25
      %s28 = sphi 0, %s26
      %s29 = sphi 0, %s27
      %s45 = sphi 0, %s47
      %s48 = sphi 0, %s45
      %s49 = sphi 0, %s48
      %s65 = sphi 0, %s49
      %s77 = sphi 0, %s79
      %s80 = sphi 0, %s77
      %s81 = sphi 0, %s80
      %s97 = sphi 0, %s81
      %s103 = sphi 0, %s105
      %s106 = sphi 0, %s103
      %s107 = sphi 0, %s106
      %s123 = sphi 0, %s107
    $region4: #{tpu_custom_call.1} parent=1 // loop_header_branch
      %20 = sbr.rel (%p18) target = $region8
    $region5: #{tpu_custom_call.1} parent=1 // loop_body
      %s22 = ssub.s32 %s17, 1
      %s23 = ssub.s32 %s17, 2
      %s30 = sadd.s32 1, %s25
      %p31 = scmp.ge.s32.totalorder %s30, 1
      %s32 = scalar_select %p31, 0, %s30
      %s33 = sadd.s32 1, %s24
      %s34 = scalar_select %p31, %s33, %s24
      %p35 = scmp.ge.s32.totalorder %s34, 2
      %s36 = scalar_select %p35, 0, %s34
      %s37 = sadd.s32 %s24, %s25
      %p38 = scmp.lt.s32.totalorder %s37, 0
      %s39 = scalar_select %p38, %s37, 0
      %s40 = sadd.s32 %s36, %s32
      %p41 = scmp.lt.s32.totalorder %s40, 0
      %s42 = scalar_select %p41, %s40, 0
      %s43 = ssub.s32 %s39, %s42
      %p44 = scmp.eq.s32.totalorder %s43, 0
      %s46 = sadd.s32 %s45, 1
      %s47 = scalar_select %p44, %s45, %s46
      %p50 = pneg %p44
      %p51 = scmp.eq.s32.totalorder %s17, 1
      %p52 = por %p50, %p51
      %p53 = scmp.ne.s32.totalorder %s45, %s48
      %p54 = scmp.eq.s32.totalorder %s17, 0
      %p55 = por %p53, %p54
      %p56 = scmp.ne.s32.totalorder %s45, %s48
      %p57 = scmp.eq.s32.totalorder %s22, 1
      %p58 = por %p56, %p57
      %p59 = scmp.ne.s32.totalorder %s48, %s49
      %p60 = scmp.eq.s32.totalorder %s22, 0
      %p61 = por %p59, %p60
      %p62 = scmp.ne.s32.totalorder %s48, %s49
      %p63 = scmp.eq.s32.totalorder %s23, 1
      %p64 = por %p62, %p63
      %p66 = scmp.ne.s32.totalorder %s49, %s65
      %p67 = scmp.eq.s32.totalorder %s23, 0
      %p68 = por %p66, %p67
      %s69 = sadd.s32 %s24, %s25
      %p70 = scmp.lt.s32.totalorder %s69, 0
      %s71 = scalar_select %p70, %s69, 0
      %s72 = sadd.s32 %s36, %s32
      %p73 = scmp.lt.s32.totalorder %s72, 0
      %s74 = scalar_select %p73, %s72, 0
      %s75 = ssub.s32 %s71, %s74
      %p76 = scmp.eq.s32.totalorder %s75, 0
      %s78 = sadd.s32 %s77, 1
      %s79 = scalar_select %p76, %s77, %s78
      %p82 = pneg %p76
      %p83 = scmp.eq.s32.totalorder %s17, 1
      %p84 = por %p82, %p83
      %p85 = scmp.ne.s32.totalorder %s77, %s80
      %p86 = scmp.eq.s32.totalorder %s17, 0
      %p87 = por %p85, %p86
      %p88 = scmp.ne.s32.totalorder %s77, %s80
      %p89 = scmp.eq.s32.totalorder %s22, 1
      %p90 = por %p88, %p89
      %p91 = scmp.ne.s32.totalorder %s80, %s81
      %p92 = scmp.eq.s32.totalorder %s22, 0
      %p93 = por %p91, %p92
      %p94 = scmp.ne.s32.totalorder %s80, %s81
      %p95 = scmp.eq.s32.totalorder %s23, 1
      %p96 = por %p94, %p95
      %p98 = scmp.ne.s32.totalorder %s81, %s97
      %p99 = scmp.eq.s32.totalorder %s23, 0
      %p100 = por %p98, %p99
      %s101 = ssub.s32 %s24, %s36
      %p102 = scmp.eq.s32.totalorder %s101, 0
      %s104 = sadd.s32 %s103, 1
      %s105 = scalar_select %p102, %s103, %s104
      %p108 = pneg %p102
      %p109 = scmp.eq.s32.totalorder %s17, 1
      %p110 = por %p108, %p109
      %p111 = scmp.ne.s32.totalorder %s103, %s106
      %p112 = scmp.eq.s32.totalorder %s17, 0
      %p113 = por %p111, %p112
      %p114 = scmp.ne.s32.totalorder %s103, %s106
      %p115 = scmp.eq.s32.totalorder %s22, 1
      %p116 = por %p114, %p115
      %p117 = scmp.ne.s32.totalorder %s106, %s107
      %p118 = scmp.eq.s32.totalorder %s22, 0
      %p119 = por %p117, %p118
      %p120 = scmp.ne.s32.totalorder %s106, %s107
      %p121 = scmp.eq.s32.totalorder %s23, 1
      %p122 = por %p120, %p121
      %p124 = scmp.ne.s32.totalorder %s107, %s123
      %p125 = scmp.eq.s32.totalorder %s23, 0
      %p126 = por %p124, %p125
      %p127 = scmp.le.s32.totalorder 1, %s17
      %p128 = scmp.lt.s32.totalorder %s17, 3
      %p129 = pnand %p127, %p128
      %p130 = pneg %p129
      // Predicated region
      $region9: #{tpu_custom_call.1} parent=5 // pred_check
        _
      $region10: #{tpu_custom_call.1} parent=5 // pred_check_branch
        %132 = sbr.rel (%p129) target = $region12
      $region11: #{tpu_custom_call.1} parent=5 // pred_region
        %s133 = ssub.s32 %s17, 1
      $region12: #{tpu_custom_call.1} parent=5 // pred_fallthru
        _
      %p134 = scmp.lt.s32.totalorder %s17, 2
      // Predicated region
      $region13: #{tpu_custom_call.1} parent=5 // pred_check
        %p135 = pneg %p134
      $region14: #{tpu_custom_call.1} parent=5 // pred_check_branch
        %137 = sbr.rel (%p135) target = $region16
      $region15: #{tpu_custom_call.1} parent=5 // pred_region
        // Predicated region
        $region17: #{tpu_custom_call.1} parent=15 // pred_check
          %p138 = pneg %p55
        $region18: #{tpu_custom_call.1} parent=15 // pred_check_branch
          %140 = sbr.rel (%p138) target = $region20
        $region19: #{tpu_custom_call.1} parent=15 // pred_region
          %s141 = sand.u32 %s45, 1
          %s142 = scalar_lea.sflag [#allocation4], %s141
          %s143 = sand.u32 %s45, 1
          %s144 = smul.addr %s143, 16
          %s145 = scalar_lea.vmem [#allocation3], %s144
          %s146 = sadd.s32 %s24, %s25
          %p147 = scmp.lt.s32.totalorder %s146, 0
          %s148 = scalar_select %p147, %s146, 0
          %s149 = smul.u32 2, %s148
          %s151 = ssub.s32 256, 256
          %152 = vsyncadd %s142, %s151
          %s153 = smul.addr %s149, 128
          %s154 = scalar_lea.hbm %s0, %s153
          %s155 = sshll.u32 %s145, 4
          %s156 = int_to_ptr.vmem [resolvable:$true] %s155
          %161 = dma.hbm_to_vmem [thread:$0]  %s154, 256, %s156, %s142, 128, 128, 8
        $region20: #{tpu_custom_call.1} parent=15 // pred_fallthru
          _
        // Predicated region
        $region21: #{tpu_custom_call.1} parent=15 // pred_check
          %p162 = pneg %p87
        $region22: #{tpu_custom_call.1} parent=15 // pred_check_branch
          %164 = sbr.rel (%p162) target = $region24
        $region23: #{tpu_custom_call.1} parent=15 // pred_region
          %s165 = sand.u32 %s77, 1
          %s166 = scalar_lea.sflag [#allocation7], %s165
          %s167 = sand.u32 %s77, 1
          %s168 = smul.addr %s167, 16
          %s169 = scalar_lea.vmem [#allocation6], %s168
          %s170 = sadd.s32 %s24, %s25
          %p171 = scmp.lt.s32.totalorder %s170, 0
          %s172 = scalar_select %p171, %s170, 0
          %s173 = smul.u32 2, %s172
          %s175 = ssub.s32 256, 256
          %176 = vsyncadd %s166, %s175
          %s177 = smul.addr %s173, 128
          %s178 = scalar_lea.hbm %s1, %s177
          %s179 = sshll.u32 %s169, 4
          %s180 = int_to_ptr.vmem [resolvable:$true] %s179
          %185 = dma.hbm_to_vmem [thread:$0]  %s178, 256, %s180, %s166, 128, 128, 8
        $region24: #{tpu_custom_call.1} parent=15 // pred_fallthru
          _
      $region16: #{tpu_custom_call.1} parent=5 // pred_fallthru
        _
      %p186 = scmp.le.s32.totalorder 1, %s17
      %p187 = scmp.lt.s32.totalorder %s17, 3
      %p188 = pnand %p186, %p187
      %p189 = pneg %p188
      // Predicated region
      $region25: #{tpu_custom_call.1} parent=5 // pred_check
        _
      $region26: #{tpu_custom_call.1} parent=5 // pred_check_branch
        %191 = sbr.rel (%p188) target = $region28
      $region27: #{tpu_custom_call.1} parent=5 // pred_region
        %s192 = ssub.s32 %s17, 1
        %s193 = sand.u32 %s48, 1
        %s194 = scalar_lea.sflag [#allocation4], %s193
        %s195 = sand.u32 %s48, 1
        %s196 = smul.addr %s195, 16
        %s197 = scalar_lea.vmem [#allocation3], %s196
        // Predicated region
        $region29: #{tpu_custom_call.1} parent=27 // pred_check
          %p198 = pneg %p61
        $region30: #{tpu_custom_call.1} parent=27 // pred_check_branch
          %200 = sbr.rel (%p198) target = $region32
        $region31: #{tpu_custom_call.1} parent=27 // pred_region
          %201 = dma.done %s194, 256
        $region32: #{tpu_custom_call.1} parent=27 // pred_fallthru
          _
        %s202 = sand.u32 %s80, 1
        %s203 = scalar_lea.sflag [#allocation7], %s202
        %s204 = sand.u32 %s80, 1
        %s205 = smul.addr %s204, 16
        %s206 = scalar_lea.vmem [#allocation6], %s205
        // Predicated region
        $region33: #{tpu_custom_call.1} parent=27 // pred_check
          %p207 = pneg %p93
        $region34: #{tpu_custom_call.1} parent=27 // pred_check_branch
          %209 = sbr.rel (%p207) target = $region36
        $region35: #{tpu_custom_call.1} parent=27 // pred_region
          %210 = dma.done %s203, 256
        $region36: #{tpu_custom_call.1} parent=27 // pred_fallthru
          _
        %s211 = sand.u32 %s48, 1
        %s212 = scalar_lea.sflag [#allocation4], %s211
        %s213 = sand.u32 %s48, 1
        %s214 = smul.addr %s213, 16
        %s215 = scalar_lea.vmem [#allocation3], %s214
        %p216 = pneg %p61
        %p217 = pneg %p58
        %s218 = sand.u32 %s80, 1
        %s219 = scalar_lea.sflag [#allocation7], %s218
        %s220 = sand.u32 %s80, 1
        %s221 = smul.addr %s220, 16
        %s222 = scalar_lea.vmem [#allocation6], %s221
        %p223 = pneg %p93
        %p224 = pneg %p90
        %p225 = pneg %p119
        %p226 = pneg %p116
        %s227 = sand.u32 %s106, 1
        %s228 = scalar_lea.sflag [#allocation5], %s227
        %s229 = sand.u32 %s106, 1
        %s230 = smul.addr %s229, 8
        %s231 = scalar_lea.vmem [#allocation8], %s230
        %s232 = sadd.s32 %s26, %s27
        %p233 = scmp.lt.s32.totalorder %s232, 0
        %s234 = scalar_select %p233, %s232, 0
        %s235 = smul.u32 2, %s234
        %s236 = sadd.s32 %s26, %s27
        %p237 = scmp.lt.s32.totalorder %s236, 0
        %s238 = scalar_select %p237, %s236, 0
        %s239 = smul.u32 2, %s238
        %p240 = scmp.eq.s32.totalorder %s27, 0
        // Predicated region
        $region37: #{tpu_custom_call.1} parent=27 // pred_check
          %p241 = pneg %p240
        $region38: #{tpu_custom_call.1} parent=27 // pred_check_branch
          %243 = sbr.rel (%p241) target = $region40
        $region39: #{tpu_custom_call.1} parent=27 // pred_region
          %244 = vst [vmem:[#allocation2] sm:$0xff] 0.0
        $region40: #{tpu_custom_call.1} parent=27 // pred_fallthru
          _
        %s245 = sadd.s32 %s26, %s27
        %s246 = smul.u32 %s245, 16
        %v247 = vld [vmem:[%s197] sm:$0xff]
        %v248 = vld [vmem:[%s197 + $0x8] sm:$0xff]
        %v249 = vld [vmem:[%s206] sm:$0xff]
        %v250 = vld [vmem:[%s206 + $0x8] sm:$0xff]
        %v251 = vsub.f32 %v247, %v249
        %v252 = vsub.f32 %v248, %v250
        %v253 = vmul.f32 %v251, %v251
        %v254 = vmul.f32 %v252, %v252
        %v255 = vlaneseq
        %v256 = vshrl.u32 %v255, 7
        %v257 = vadd.s32 %v256, 8
        %s258 = sadd.s32 %s246, 0
        %v259 = vstv %s258
        %v260 = vadd.s32 %v259, %v256
        %v261 = vadd.s32 %v259, %v257
        %vm262 = vcmp.lt.s32.totalorder %v260, 16
        %vm263 = vcmp.lt.s32.totalorder %v261, 16
        %v264 = vsel %vm262, %v253, 0.0
        %v265 = vsel %vm263, %v254, 0.0
        %v266 = vld [vmem:[#allocation2] sm:$0xff]
        %v267 = vadd.f32 %v264, %v265
        %v268 = vadd.f32 %v266, %v267
        %269 = vst [vmem:[#allocation2] sm:$0xff] %v268
        // Predicated region
        $region41: #{tpu_custom_call.1} parent=27 // pred_check
          %p270 = pneg %p240
        $region42: #{tpu_custom_call.1} parent=27 // pred_check_branch
          %272 = sbr.rel (%p270) target = $region44
        $region43: #{tpu_custom_call.1} parent=27 // pred_region
          %v273 = vld [vmem:[#allocation2] sm:$0xff]
          %274 = vst [vmem:[%s231] sm:$0xff] %v273
        $region44: #{tpu_custom_call.1} parent=27 // pred_fallthru
          _
        %s275 = sand.u32 %s106, 1
        %s276 = scalar_lea.sflag [#allocation5], %s275
        %s277 = sand.u32 %s106, 1
        %s278 = smul.addr %s277, 8
        %s279 = scalar_lea.vmem [#allocation8], %s278
        // Predicated region
        $region45: #{tpu_custom_call.1} parent=27 // pred_check
          %p280 = pneg %p116
        $region46: #{tpu_custom_call.1} parent=27 // pred_check_branch
          %282 = sbr.rel (%p280) target = $region48
        $region47: #{tpu_custom_call.1} parent=27 // pred_region
          %s284 = ssub.s32 128, 128
          %285 = vsyncadd %s276, %s284
          %s286 = smul.addr %s26, 128
          %s287 = scalar_lea.hbm %s2, %s286
          %s289 = sshll.u32 %s279, 4
          %s290 = int_to_ptr.vmem [resolvable:$true] %s289
          %292 = dma.vmem_to_hbm [thread:$0]  %s290, 128, %s287, %s276
        $region48: #{tpu_custom_call.1} parent=27 // pred_fallthru
          _
      $region28: #{tpu_custom_call.1} parent=5 // pred_fallthru
        _
      %p293 = scmp.le.s32.totalorder 2, %s17
      // Predicated region
      $region49: #{tpu_custom_call.1} parent=5 // pred_check
        %p294 = pneg %p293
      $region50: #{tpu_custom_call.1} parent=5 // pred_check_branch
        %296 = sbr.rel (%p294) target = $region52
      $region51: #{tpu_custom_call.1} parent=5 // pred_region
        %s297 = ssub.s32 %s17, 2
        // Predicated region
        $region53: #{tpu_custom_call.1} parent=51 // pred_check
          %p298 = pneg %p122
        $region54: #{tpu_custom_call.1} parent=51 // pred_check_branch
          %300 = sbr.rel (%p298) target = $region56
        $region55: #{tpu_custom_call.1} parent=51 // pred_region
          %s301 = sand.u32 %s107, 1
          %s302 = scalar_lea.sflag [#allocation5], %s301
          %s303 = sand.u32 %s107, 1
          %s304 = smul.addr %s303, 8
          %s305 = scalar_lea.vmem [#allocation8], %s304
          %306 = dma.done %s302, 128
        $region56: #{tpu_custom_call.1} parent=51 // pred_fallthru
          _
      $region52: #{tpu_custom_call.1} parent=5 // pred_fallthru
        _
    $region6: #{tpu_custom_call.1} parent=1 // loop_footer
      %s21 = sadd.s32 1, %s17
    $region7: #{tpu_custom_call.1} parent=1 // loop_footer_branch
      %16 = sbr.rel target = $region3
    $region8: #{tpu_custom_call.1} parent=1 // loop_exit
      _
    %307 = vsyncpa [#allocation4], 1
    %s308 = scalar_lea.sflag [#allocation4], 1
    %309 = vsyncpa %s308, 1
    %310 = vsyncpa [#allocation7], 1
    %s311 = scalar_lea.sflag [#allocation7], 1
    %312 = vsyncpa %s311, 1
    %313 = vsyncpa [#allocation5], 1
    %s314 = scalar_lea.sflag [#allocation5], 1
    %315 = vsyncpa %s314, 1

</llo_original>
